<compile_context>
chip_gen: v6e
topology: v6e:2x2x1
jax: 0.10.0
libtpu: 0.0.40
codegen_flags: <defaults>
</compile_context>

<pallas_src>
import functools

import jax
import jax.numpy as jnp
from jax import lax
from jax.experimental import pallas as pl
from jax.experimental.pallas import tpu as pltpu

_EPS = 1e-5  # PyTorch BatchNorm2d default eps

# Scoped VMEM limit: above v5e's 16 MiB default, equal to v7x's 32 MiB default
# (64 MiB physical); double-buffered in+out blocks are kept <= ~16 MiB by the
# block-budget in _choose_image_block below, leaving ample headroom.
_VMEM_LIMIT_BYTES = 32 << 20
_BLOCK_BUDGET_BYTES = 4 << 20   # per-grid-step in+out block budget (single copy)


# ----------------------------- Pallas kernel ------------------------------ #
def _shuffle_block_kernel(x_ref, m_ref, a1_ref, b1_ref, k3_ref, b2_ref,
                          wp_ref, b3_ref, o_ref, *, B, W, HWp):
    """Fused stride-1 Shuffle_Block: branch2 + concat + channel_shuffle.

    x_ref  : (B, 2, C, HWp)  B images; group 0 = x1 (passthrough),
                             group 1 = x2 (branch2 input).  bf16.
    m_ref  : (4, HWp)  f32 0/1 boundary masks [w>=1, w<=W-2, h>=1, h<=H-2]
    a1_ref : (C, 1)   depthwise 1x1 weight * BN1 scale        (f32)
    b1_ref : (C, 1)   BN1 bias                                 (f32)
    k3_ref : (9, C, 1) depthwise 3x3 taps, tap-major, BN2 scale folded (f32)
    b2_ref : (C, 1)   BN2 bias                                 (f32)
    wp_ref : (C, C)   pointwise 1x1 weight, BN3 scale folded   (bf16)
    b3_ref : (C, 1)   BN3 bias                                 (f32)
    o_ref  : (B, C, 2*HWp)  lanes [0:HWp] = x1_c, lanes [HWp:] = branch2_c;
             a free reshape to (2C, H, W) realizes channel_shuffle(cat, 2).
    """
    f32 = jnp.float32
    a1 = a1_ref[...]
    b1 = b1_ref[...]
    k3 = k3_ref[...]                       # (9, C, 1), tap index (dh+1)*3+(dw+1)
    b2 = b2_ref[...]
    b3 = b3_ref[...]
    wp = wp_ref[...]                       # (C, C) bf16
    m_wl = m_ref[0:1, :]                   # valid where w_idx >= 1   (dw = -1)
    m_wr = m_ref[1:2, :]                   # valid where w_idx <= W-2 (dw = +1)
    m_hu = m_ref[2:3, :]                   # valid where h_idx >= 1   (dh = -1)
    m_hd = m_ref[3:4, :]                   # valid where h_idx <= H-2 (dh = +1)

    for b in range(B):                     # unrolled; B is block-budget sized
        x1 = x_ref[b, 0]                   # (C, HWp) passthrough (bf16)
        x2 = x_ref[b, 1].astype(f32)       # (C, HWp)

        # --- DWConv k=1 + BN1 + ReLU (BN folded into a1 / b1) --------------
        t = jnp.maximum(x2 * a1 + b1, 0.0)

        # --- depthwise 3x3 conv, padding=1 (BN2 scale folded into taps) ----
        # 4 XLU rolls + 4 boundary-mask multiplies total:
        #   two +/-1 lane-shifted copies -> three per-row tap sums ->
        #   +/-W row rolls with h-boundary masks.  Masked taps reproduce the
        #   zero padding applied after the ReLU stage above.
        tn = pltpu.roll(t, shift=1, axis=1) * m_wl            # tn[i] = t[i-1]
        tp = pltpu.roll(t, shift=HWp - 1, axis=1) * m_wr      # tp[i] = t[i+1]
        s_m1 = k3[0] * tn + k3[1] * t + k3[2] * tp            # kernel row dh=-1
        s_0 = k3[3] * tn + k3[4] * t + k3[5] * tp             # kernel row dh= 0
        s_p1 = k3[6] * tn + k3[7] * t + k3[8] * tp            # kernel row dh=+1
        y = (s_0
             + pltpu.roll(s_m1, shift=W, axis=1) * m_hu       # s_m1[i - W]
             + pltpu.roll(s_p1, shift=HWp - W, axis=1) * m_hd  # s_p1[i + W]
             + b2)                                            # (C, HWp) f32

        # --- pointwise 1x1 conv + BN3 + ReLU (folded into wp / b3) ---------
        # Native bf16 MXU matmul, f32 accumulate: M=C, K=C, N=HWp lane-dense.
        z = jnp.dot(wp, y.astype(wp.dtype), preferred_element_type=f32)
        z = jnp.maximum(z + b3, 0.0)

        # --- fused concat + channel_shuffle(groups=2), lane-aligned halves -
        o_ref[b, :, :HWp] = x1.astype(o_ref.dtype)
        o_ref[b, :, HWp:] = z.astype(o_ref.dtype)


def _choose_image_block(N, C, HWp, itemsize,
                        block_budget_bytes=_BLOCK_BUDGET_BYTES):
    """Images per grid step, sized for HBM-bound roofline but VMEM-safe."""
    per_img = 4 * C * HWp * itemsize          # (2,C,HWp) in + (C,2*HWp) out
    b_max = max(1, block_budget_bytes // per_img)
    if N >= 2:
        b_max = min(b_max, N // 2)            # keep grid >= 2 (v7x megacore)
    b_max = max(1, min(b_max, N))
    B = 1
    for d in range(2, b_max + 1):             # largest divisor of N <= b_max
        if N % d == 0:
            B = d
    return B


def _make_boundary_masks(H, W, HWp):
    pos = jnp.arange(HWp)
    in_img = pos < H * W
    w_idx = pos % W
    h_idx = pos // W
    m_wl = (w_idx >= 1) & in_img
    m_wr = (w_idx <= W - 2) & in_img
    m_hu = (h_idx >= 1) & in_img
    m_hd = (h_idx <= H - 2) & in_img
    return jnp.stack([m_wl, m_wr, m_hu, m_hd]).astype(jnp.float32)


def shuffle_block_pallas(x_g, masks, a1, b1, k3, b2, wp, b3, *, W, B):
    """x_g: (N, 2, C, HWp). Returns (N, C, 2*HWp)."""
    N, _, C, HWp = x_g.shape
    kern = functools.partial(_shuffle_block_kernel, B=B, W=W, HWp=HWp)
    return pl.pallas_call(
        kern,
        out_shape=jax.ShapeDtypeStruct((N, C, 2 * HWp), x_g.dtype),
        grid=(N // B,),
        in_specs=[
            pl.BlockSpec((B, 2, C, HWp), lambda n: (n, 0, 0, 0)),
            pl.BlockSpec((4, HWp), lambda n: (0, 0)),      # masks: VMEM-resident
            pl.BlockSpec((C, 1), lambda n: (0, 0)),
            pl.BlockSpec((C, 1), lambda n: (0, 0)),
            pl.BlockSpec((9, C, 1), lambda n: (0, 0, 0)),
            pl.BlockSpec((C, 1), lambda n: (0, 0)),
            pl.BlockSpec((C, C), lambda n: (0, 0)),
            pl.BlockSpec((C, 1), lambda n: (0, 0)),
        ],
        out_specs=pl.BlockSpec((B, C, 2 * HWp), lambda n: (n, 0, 0)),
        compiler_params=pltpu.CompilerParams(
            dimension_semantics=("parallel",),
            vmem_limit_bytes=_VMEM_LIMIT_BYTES),
    )(x_g, masks, a1, b1, k3, b2, wp, b3)


# ------------------------ parameter setup / folding ----------------------- #
def init_params(key, bf):
    ks = jax.random.split(key, 16)
    p = {
        # DWConv k=1: Conv2d(bf, bf, 1, groups=bf) -> weight (bf,1,1,1)
        "w_dw1": 0.5 * jax.random.normal(ks[0], (bf,), jnp.float32),
        "bn1_gamma": 1.0 + 0.1 * jax.random.normal(ks[1], (bf,)),
        "bn1_beta": 0.1 * jax.random.normal(ks[2], (bf,)),
        "bn1_mean": 0.1 * jax.random.normal(ks[3], (bf,)),
        "bn1_var": jax.random.uniform(ks[4], (bf,), minval=0.5, maxval=1.5),
        # DWConv k=3: Conv2d(bf, bf, 3, pad=1, groups=bf) -> weight (bf,1,3,3)
        "w_dw3": 0.2 * jax.random.normal(ks[5], (bf, 3, 3), jnp.float32),
        "bn2_gamma": 1.0 + 0.1 * jax.random.normal(ks[6], (bf,)),
        "bn2_beta": 0.1 * jax.random.normal(ks[7], (bf,)),
        "bn2_mean": 0.1 * jax.random.normal(ks[8], (bf,)),
        "bn2_var": jax.random.uniform(ks[9], (bf,), minval=0.5, maxval=1.5),
        # Conv k=1 g=1: weight (bf, bf, 1, 1)
        "w_pw": 0.3 * jax.random.normal(ks[10], (bf, bf), jnp.float32),
        "bn3_gamma": 1.0 + 0.1 * jax.random.normal(ks[11], (bf,)),
        "bn3_beta": 0.1 * jax.random.normal(ks[12], (bf,)),
        "bn3_mean": 0.1 * jax.random.normal(ks[13], (bf,)),
        "bn3_var": jax.random.uniform(ks[14], (bf,), minval=0.5, maxval=1.5),
    }
    return p


def fold_params(p):
    f32 = jnp.float32
    s1 = p["bn1_gamma"] / jnp.sqrt(p["bn1_var"] + _EPS)
    a1 = (p["w_dw1"] * s1).reshape(-1, 1)
    b1 = (p["bn1_beta"] - p["bn1_mean"] * s1).reshape(-1, 1)

    s2 = p["bn2_gamma"] / jnp.sqrt(p["bn2_var"] + _EPS)
    k3 = p["w_dw3"] * s2[:, None, None]                       # (C,3,3)
    k3 = jnp.transpose(k3, (1, 2, 0)).reshape(9, -1, 1)       # (9,C,1) tap-major
    b2 = (p["bn2_beta"] - p["bn2_mean"] * s2).reshape(-1, 1)

    s3 = p["bn3_gamma"] / jnp.sqrt(p["bn3_var"] + _EPS)
    wp = p["w_pw"] * s3[:, None]                              # (Cout, Cin)
    b3 = (p["bn3_beta"] - p["bn3_mean"] * s3).reshape(-1, 1)
    return (a1.astype(f32), b1.astype(f32), k3.astype(f32),
            b2.astype(f32), wp.astype(f32), b3.astype(f32))


# ------------------------------ forward pass ------------------------------ #
def shuffle_block_forward(x_nchw, p, *, act_dtype=jnp.bfloat16):
    """Shuffle_Block.forward, stride == 1 (inp == oup == 2*branch_features)."""
    N, Cin, H, W = x_nchw.shape
    bf = Cin // 2
    HW = H * W
    HWp = ((HW + 127) // 128) * 128          # lane-align the flattened spatial

    a1, b1, k3, b2, wp, b3 = fold_params(p)
    wp = wp.astype(act_dtype)                # bf16 pointwise weight (native MXU)

    # (N, 2C, H, W) -> (N, 2, C, H*W): free reshape; group 0 = x1, 1 = x2.
    x_g = x_nchw.astype(act_dtype).reshape(N, 2, bf, HW)
    if HWp != HW:
        x_g = jnp.pad(x_g, ((0, 0), (0, 0), (0, 0), (0, HWp - HW)))

    masks = _make_boundary_masks(H, W, HWp)
    B = _choose_image_block(N, bf, HWp, jnp.dtype(act_dtype).itemsize)

    out = shuffle_block_pallas(x_g, masks, a1, b1, k3, b2, wp, b3, W=W, B=B)

    # (N, C, 2*HWp) -> (N, 2C, H, W): channel order becomes
    # [x1_0, br2_0, x1_1, br2_1, ...] == channel_shuffle(cat([x1, br2]), 2).
    out = out.reshape(N, bf, 2, HWp)
    if HWp != HW:
        out = out[..., :HW]
    return out.reshape(N, 2 * bf, H, W).astype(x_nchw.dtype)


# ------------------------- pure-JAX reference (NCHW) ---------------------- #
def _bn_eval(x, gamma, beta, mean, var):
    s = gamma / jnp.sqrt(var + _EPS)
    return x * s[None, :, None, None] + (beta - mean * s)[None, :, None, None]


def reference_forward(x_nchw, p):
    N, Cin, H, W = x_nchw.shape
    bf = Cin // 2
    x1, x2 = x_nchw[:, :bf], x_nchw[:, bf:]
    dn = ("NCHW", "OIHW", "NCHW")
    t = lax.conv_general_dilated(x2, p["w_dw1"].reshape(bf, 1, 1, 1),
                                 (1, 1), "VALID", dimension_numbers=dn,
                                 feature_group_count=bf)
    t = jax.nn.relu(_bn_eval(t, p["bn1_gamma"], p["bn1_beta"],
                             p["bn1_mean"], p["bn1_var"]))
    y = lax.conv_general_dilated(t, p["w_dw3"].reshape(bf, 1, 3, 3),
                                 (1, 1), ((1, 1), (1, 1)),
                                 dimension_numbers=dn, feature_group_count=bf)
    y = _bn_eval(y, p["bn2_gamma"], p["bn2_beta"], p["bn2_mean"], p["bn2_var"])
    z = lax.conv_general_dilated(y, p["w_pw"].reshape(bf, bf, 1, 1),
                                 (1, 1), "VALID", dimension_numbers=dn)
    z = jax.nn.relu(_bn_eval(z, p["bn3_gamma"], p["bn3_beta"],
                             p["bn3_mean"], p["bn3_var"]))
    out = jnp.concatenate([x1, z], axis=1)
    out = out.reshape(N, 2, bf, H, W).transpose(0, 2, 1, 3, 4)
    return out.reshape(N, 2 * bf, H, W)


if __name__ == "__main__":
    key = jax.random.PRNGKey(0)
    kx, kp = jax.random.split(key)
    inp = oup = 8          # branch_features = 4; stride=1 requires inp == 2*bf
    N, H, W = 2, 16, 16
    x = jax.random.normal(kx, (N, inp, H, W), jnp.float32)
    params = init_params(kp, inp // 2)

    out = shuffle_block_forward(x, params)
    out = jax.block_until_ready(out)

    ref = reference_forward(x, params)
    assert out.shape == (N, oup, H, W), out.shape
    # bf16 activations / bf16 matmul operands (f32 accumulate): loose tolerance.
    if not jnp.allclose(out, ref, rtol=2e-2, atol=2e-2):
        raise AssertionError("Pallas Shuffle_Block output mismatch vs reference")
    print("KERNEL_OK")
</pallas_src>

<mosaic_0001>
module attributes {stable_mosaic.version = 11 : i64} {
  func.func @_shuffle_block_kernel(%arg0: i32, %arg1: memref<1x2x4x256xbf16, #tpu.memory_space<vmem>>, %arg2: memref<4x256xf32, #tpu.memory_space<vmem>>, %arg3: memref<4x1xf32, #tpu.memory_space<vmem>>, %arg4: memref<4x1xf32, #tpu.memory_space<vmem>>, %arg5: memref<9x4x1xf32, #tpu.memory_space<vmem>>, %arg6: memref<4x1xf32, #tpu.memory_space<vmem>>, %arg7: memref<4x4xbf16, #tpu.memory_space<vmem>>, %arg8: memref<4x1xf32, #tpu.memory_space<vmem>>, %arg9: memref<1x4x512xbf16, #tpu.memory_space<vmem>>) attributes {dimension_semantics = [#tpu.dimension_semantics<parallel>], iteration_bounds = array<i64: 2>, scalar_prefetch = 0 : i64, scratch_operands = 0 : i64, tpu.core_type = #tpu.core_type<tc>, window_params = [{transform_indices = @transform_0, window_bounds = array<i64: 1, 2, 4, 256>}, {pipeline_mode = #tpu.pipeline_mode<synchronous>, transform_indices = @transform_1, window_bounds = array<i64: 4, 256>}, {pipeline_mode = #tpu.pipeline_mode<synchronous>, transform_indices = @transform_2, window_bounds = array<i64: 4, 1>}, {pipeline_mode = #tpu.pipeline_mode<synchronous>, transform_indices = @transform_3, window_bounds = array<i64: 4, 1>}, {pipeline_mode = #tpu.pipeline_mode<synchronous>, transform_indices = @transform_4, window_bounds = array<i64: 9, 4, 1>}, {pipeline_mode = #tpu.pipeline_mode<synchronous>, transform_indices = @transform_5, window_bounds = array<i64: 4, 1>}, {pipeline_mode = #tpu.pipeline_mode<synchronous>, transform_indices = @transform_6, window_bounds = array<i64: 4, 4>}, {pipeline_mode = #tpu.pipeline_mode<synchronous>, transform_indices = @transform_7, window_bounds = array<i64: 4, 1>}, {transform_indices = @transform_8, window_bounds = array<i64: 1, 4, 512>}]} {
    %c0 = arith.constant 0 : index
    %c0_0 = arith.constant 0 : index
    %0 = vector.load %arg3[%c0, %c0_0] : memref<4x1xf32, #tpu.memory_space<vmem>>, vector<4x1xf32>
    %c0_1 = arith.constant 0 : index
    %c0_2 = arith.constant 0 : index
    %1 = vector.load %arg4[%c0_1, %c0_2] : memref<4x1xf32, #tpu.memory_space<vmem>>, vector<4x1xf32>
    %c0_3 = arith.constant 0 : index
    %c0_4 = arith.constant 0 : index
    %c0_5 = arith.constant 0 : index
    %2 = vector.load %arg5[%c0_3, %c0_4, %c0_5] : memref<9x4x1xf32, #tpu.memory_space<vmem>>, vector<9x4x1xf32>
    %c0_6 = arith.constant 0 : index
    %c0_7 = arith.constant 0 : index
    %3 = vector.load %arg6[%c0_6, %c0_7] : memref<4x1xf32, #tpu.memory_space<vmem>>, vector<4x1xf32>
    %c0_8 = arith.constant 0 : index
    %c0_9 = arith.constant 0 : index
    %4 = vector.load %arg8[%c0_8, %c0_9] : memref<4x1xf32, #tpu.memory_space<vmem>>, vector<4x1xf32>
    %c0_10 = arith.constant 0 : index
    %c0_11 = arith.constant 0 : index
    %5 = vector.load %arg7[%c0_10, %c0_11] : memref<4x4xbf16, #tpu.memory_space<vmem>>, vector<4x4xbf16>
    %c0_12 = arith.constant 0 : index
    %c0_13 = arith.constant 0 : index
    %6 = vector.load %arg2[%c0_12, %c0_13] : memref<4x256xf32, #tpu.memory_space<vmem>>, vector<1x256xf32>
    %c1 = arith.constant 1 : index
    %c0_14 = arith.constant 0 : index
    %7 = vector.load %arg2[%c1, %c0_14] : memref<4x256xf32, #tpu.memory_space<vmem>>, vector<1x256xf32>
    %c2 = arith.constant 2 : index
    %c0_15 = arith.constant 0 : index
    %8 = vector.load %arg2[%c2, %c0_15] : memref<4x256xf32, #tpu.memory_space<vmem>>, vector<1x256xf32>
    %c3 = arith.constant 3 : index
    %c0_16 = arith.constant 0 : index
    %9 = vector.load %arg2[%c3, %c0_16] : memref<4x256xf32, #tpu.memory_space<vmem>>, vector<1x256xf32>
    %c0_17 = arith.constant 0 : index
    %c0_18 = arith.constant 0 : index
    %c0_19 = arith.constant 0 : index
    %c0_20 = arith.constant 0 : index
    %10 = vector.load %arg1[%c0_17, %c0_18, %c0_19, %c0_20] : memref<1x2x4x256xbf16, #tpu.memory_space<vmem>>, vector<1x1x4x256xbf16>
    %11 = vector.shape_cast %10 : vector<1x1x4x256xbf16> to vector<4x256xbf16>
    %c0_21 = arith.constant 0 : index
    %c1_22 = arith.constant 1 : index
    %c0_23 = arith.constant 0 : index
    %c0_24 = arith.constant 0 : index
    %12 = vector.load %arg1[%c0_21, %c1_22, %c0_23, %c0_24] : memref<1x2x4x256xbf16, #tpu.memory_space<vmem>>, vector<1x1x4x256xbf16>
    %13 = vector.shape_cast %12 : vector<1x1x4x256xbf16> to vector<4x256xbf16>
    %14 = arith.extf %13 : vector<4x256xbf16> to vector<4x256xf32>
    %15 = vector.broadcast %0 : vector<4x1xf32> to vector<4x256xf32>
    %16 = arith.mulf %14, %15 : vector<4x256xf32>
    %17 = vector.broadcast %1 : vector<4x1xf32> to vector<4x256xf32>
    %18 = arith.addf %16, %17 : vector<4x256xf32>
    %cst = arith.constant 0.000000e+00 : f32
    %19 = vector.broadcast %cst : f32 to vector<4x256xf32>
    %20 = arith.maximumf %18, %19 : vector<4x256xf32>
    %c1_i32 = arith.constant 1 : i32
    %21 = tpu.dynamic_rotate %20 by %c1_i32 dim 1 : vector<4x256xf32>, i32 -> vector<4x256xf32>
    %22 = vector.broadcast %6 : vector<1x256xf32> to vector<4x256xf32>
    %23 = arith.mulf %21, %22 : vector<4x256xf32>
    %c255_i32 = arith.constant 255 : i32
    %24 = tpu.dynamic_rotate %20 by %c255_i32 dim 1 : vector<4x256xf32>, i32 -> vector<4x256xf32>
    %25 = vector.broadcast %7 : vector<1x256xf32> to vector<4x256xf32>
    %26 = arith.mulf %24, %25 : vector<4x256xf32>
    %27 = vector.extract_strided_slice %2 {offsets = [0, 0, 0], sizes = [1, 4, 1], strides = [1, 1, 1]} : vector<9x4x1xf32> to vector<1x4x1xf32>
    %28 = vector.shape_cast %27 : vector<1x4x1xf32> to vector<4x1xf32>
    %29 = vector.broadcast %28 : vector<4x1xf32> to vector<4x256xf32>
    %30 = arith.mulf %29, %23 : vector<4x256xf32>
    %31 = vector.extract_strided_slice %2 {offsets = [1, 0, 0], sizes = [1, 4, 1], strides = [1, 1, 1]} : vector<9x4x1xf32> to vector<1x4x1xf32>
    %32 = vector.shape_cast %31 : vector<1x4x1xf32> to vector<4x1xf32>
    %33 = vector.broadcast %32 : vector<4x1xf32> to vector<4x256xf32>
    %34 = arith.mulf %33, %20 : vector<4x256xf32>
    %35 = arith.addf %30, %34 : vector<4x256xf32>
    %36 = vector.extract_strided_slice %2 {offsets = [2, 0, 0], sizes = [1, 4, 1], strides = [1, 1, 1]} : vector<9x4x1xf32> to vector<1x4x1xf32>
    %37 = vector.shape_cast %36 : vector<1x4x1xf32> to vector<4x1xf32>
    %38 = vector.broadcast %37 : vector<4x1xf32> to vector<4x256xf32>
    %39 = arith.mulf %38, %26 : vector<4x256xf32>
    %40 = arith.addf %35, %39 : vector<4x256xf32>
    %41 = vector.extract_strided_slice %2 {offsets = [3, 0, 0], sizes = [1, 4, 1], strides = [1, 1, 1]} : vector<9x4x1xf32> to vector<1x4x1xf32>
    %42 = vector.shape_cast %41 : vector<1x4x1xf32> to vector<4x1xf32>
    %43 = vector.broadcast %42 : vector<4x1xf32> to vector<4x256xf32>
    %44 = arith.mulf %43, %23 : vector<4x256xf32>
    %45 = vector.extract_strided_slice %2 {offsets = [4, 0, 0], sizes = [1, 4, 1], strides = [1, 1, 1]} : vector<9x4x1xf32> to vector<1x4x1xf32>
    %46 = vector.shape_cast %45 : vector<1x4x1xf32> to vector<4x1xf32>
    %47 = vector.broadcast %46 : vector<4x1xf32> to vector<4x256xf32>
    %48 = arith.mulf %47, %20 : vector<4x256xf32>
    %49 = arith.addf %44, %48 : vector<4x256xf32>
    %50 = vector.extract_strided_slice %2 {offsets = [5, 0, 0], sizes = [1, 4, 1], strides = [1, 1, 1]} : vector<9x4x1xf32> to vector<1x4x1xf32>
    %51 = vector.shape_cast %50 : vector<1x4x1xf32> to vector<4x1xf32>
    %52 = vector.broadcast %51 : vector<4x1xf32> to vector<4x256xf32>
    %53 = arith.mulf %52, %26 : vector<4x256xf32>
    %54 = arith.addf %49, %53 : vector<4x256xf32>
    %55 = vector.extract_strided_slice %2 {offsets = [6, 0, 0], sizes = [1, 4, 1], strides = [1, 1, 1]} : vector<9x4x1xf32> to vector<1x4x1xf32>
    %56 = vector.shape_cast %55 : vector<1x4x1xf32> to vector<4x1xf32>
    %57 = vector.broadcast %56 : vector<4x1xf32> to vector<4x256xf32>
    %58 = arith.mulf %57, %23 : vector<4x256xf32>
    %59 = vector.extract_strided_slice %2 {offsets = [7, 0, 0], sizes = [1, 4, 1], strides = [1, 1, 1]} : vector<9x4x1xf32> to vector<1x4x1xf32>
    %60 = vector.shape_cast %59 : vector<1x4x1xf32> to vector<4x1xf32>
    %61 = vector.broadcast %60 : vector<4x1xf32> to vector<4x256xf32>
    %62 = arith.mulf %61, %20 : vector<4x256xf32>
    %63 = arith.addf %58, %62 : vector<4x256xf32>
    %64 = vector.extract_strided_slice %2 {offsets = [8, 0, 0], sizes = [1, 4, 1], strides = [1, 1, 1]} : vector<9x4x1xf32> to vector<1x4x1xf32>
    %65 = vector.shape_cast %64 : vector<1x4x1xf32> to vector<4x1xf32>
    %66 = vector.broadcast %65 : vector<4x1xf32> to vector<4x256xf32>
    %67 = arith.mulf %66, %26 : vector<4x256xf32>
    %68 = arith.addf %63, %67 : vector<4x256xf32>
    %c16_i32 = arith.constant 16 : i32
    %69 = tpu.dynamic_rotate %40 by %c16_i32 dim 1 : vector<4x256xf32>, i32 -> vector<4x256xf32>
    %70 = vector.broadcast %8 : vector<1x256xf32> to vector<4x256xf32>
    %71 = arith.mulf %69, %70 : vector<4x256xf32>
    %72 = arith.addf %54, %71 : vector<4x256xf32>
    %c240_i32 = arith.constant 240 : i32
    %73 = tpu.dynamic_rotate %68 by %c240_i32 dim 1 : vector<4x256xf32>, i32 -> vector<4x256xf32>
    %74 = vector.broadcast %9 : vector<1x256xf32> to vector<4x256xf32>
    %75 = arith.mulf %73, %74 : vector<4x256xf32>
    %76 = arith.addf %72, %75 : vector<4x256xf32>
    %77 = vector.broadcast %3 : vector<4x1xf32> to vector<4x256xf32>
    %78 = arith.addf %76, %77 : vector<4x256xf32>
    %79 = arith.truncf %78 : vector<4x256xf32> to vector<4x256xbf16>
    %cst_25 = arith.constant dense<0.000000e+00> : vector<4x256xf32>
    %80 = tpu.matmul %5, %79, %cst_25 {dimension_numbers = #tpu.dot_dimension_numbers<[1], [0], [0], [1], [0, 0, 1, 1], [], []>} : vector<4x4xbf16>, vector<4x256xbf16>, vector<4x256xf32> -> vector<4x256xf32>
    %81 = vector.broadcast %4 : vector<4x1xf32> to vector<4x256xf32>
    %82 = arith.addf %80, %81 : vector<4x256xf32>
    %cst_26 = arith.constant 0.000000e+00 : f32
    %83 = vector.broadcast %cst_26 : f32 to vector<4x256xf32>
    %84 = arith.maximumf %82, %83 : vector<4x256xf32>
    %c0_27 = arith.constant 0 : index
    %c0_28 = arith.constant 0 : index
    %c0_29 = arith.constant 0 : index
    %85 = vector.load %arg9[%c0_27, %c0_28, %c0_29] : memref<1x4x512xbf16, #tpu.memory_space<vmem>>, vector<1x4x256xbf16>
    %86 = vector.shape_cast %85 : vector<1x4x256xbf16> to vector<4x256xbf16>
    %87 = vector.shape_cast %11 : vector<4x256xbf16> to vector<1x4x256xbf16>
    tpu.vector_store %arg9[%c0_27, %c0_28, %c0_29], %87 {strides = array<i32>} : memref<1x4x512xbf16, #tpu.memory_space<vmem>>, vector<1x4x256xbf16>,
    %88 = arith.truncf %84 : vector<4x256xf32> to vector<4x256xbf16>
    %c0_30 = arith.constant 0 : index
    %c0_31 = arith.constant 0 : index
    %c256 = arith.constant 256 : index
    %89 = vector.load %arg9[%c0_30, %c0_31, %c256] : memref<1x4x512xbf16, #tpu.memory_space<vmem>>, vector<1x4x256xbf16>
    %90 = vector.shape_cast %89 : vector<1x4x256xbf16> to vector<4x256xbf16>
    %91 = vector.shape_cast %88 : vector<4x256xbf16> to vector<1x4x256xbf16>
    tpu.vector_store %arg9[%c0_30, %c0_31, %c256], %91 {strides = array<i32>} : memref<1x4x512xbf16, #tpu.memory_space<vmem>>, vector<1x4x256xbf16>,
    return
  }
  func.func @transform_0(%arg0: i32) -> (i32, i32, i32, i32) {
    %c0_i32 = arith.constant 0 : i32
    %c0_i32_0 = arith.constant 0 : i32
    %c0_i32_1 = arith.constant 0 : i32
    %c0_i32_2 = arith.constant 0 : i32
    return %arg0, %c0_i32, %c0_i32_0, %c0_i32_1 : i32, i32, i32, i32
  }
  func.func @transform_1(%arg0: i32) -> (i32, i32) {
    %c0_i32 = arith.constant 0 : i32
    %c0_i32_0 = arith.constant 0 : i32
    %c0_i32_1 = arith.constant 0 : i32
    return %c0_i32, %c0_i32_0 : i32, i32
  }
  func.func @transform_2(%arg0: i32) -> (i32, i32) {
    %c0_i32 = arith.constant 0 : i32
    %c0_i32_0 = arith.constant 0 : i32
    %c0_i32_1 = arith.constant 0 : i32
    return %c0_i32, %c0_i32_0 : i32, i32
  }
  func.func @transform_3(%arg0: i32) -> (i32, i32) {
    %c0_i32 = arith.constant 0 : i32
    %c0_i32_0 = arith.constant 0 : i32
    %c0_i32_1 = arith.constant 0 : i32
    return %c0_i32, %c0_i32_0 : i32, i32
  }
  func.func @transform_4(%arg0: i32) -> (i32, i32, i32) {
    %c0_i32 = arith.constant 0 : i32
    %c0_i32_0 = arith.constant 0 : i32
    %c0_i32_1 = arith.constant 0 : i32
    %c0_i32_2 = arith.constant 0 : i32
    return %c0_i32, %c0_i32_0, %c0_i32_1 : i32, i32, i32
  }
  func.func @transform_5(%arg0: i32) -> (i32, i32) {
    %c0_i32 = arith.constant 0 : i32
    %c0_i32_0 = arith.constant 0 : i32
    %c0_i32_1 = arith.constant 0 : i32
    return %c0_i32, %c0_i32_0 : i32, i32
  }
  func.func @transform_6(%arg0: i32) -> (i32, i32) {
    %c0_i32 = arith.constant 0 : i32
    %c0_i32_0 = arith.constant 0 : i32
    %c0_i32_1 = arith.constant 0 : i32
    return %c0_i32, %c0_i32_0 : i32, i32
  }
  func.func @transform_7(%arg0: i32) -> (i32, i32) {
    %c0_i32 = arith.constant 0 : i32
    %c0_i32_0 = arith.constant 0 : i32
    %c0_i32_1 = arith.constant 0 : i32
    return %c0_i32, %c0_i32_0 : i32, i32
  }
  func.func @transform_8(%arg0: i32) -> (i32, i32, i32) {
    %c0_i32 = arith.constant 0 : i32
    %c0_i32_0 = arith.constant 0 : i32
    %c0_i32_1 = arith.constant 0 : i32
    return %arg0, %c0_i32, %c0_i32_0 : i32, i32, i32
  }
}

</mosaic_0001>

<llo_original>
// kernel: tpu_custom_call.1
$region0: #{tpu_custom_call.1}
  #allocation0 [shape = 'u32[]', space=smem, size = 0x4, offset = 0x4, fixed_abs, tag = 'smem constant byte address 0x4 - core index']
  #allocation1 [shape = 'u32[144,128]{1,0:T(1,128)}', space=vmem, size = 0x12000, scoped, tag = 'internal scratch']
  %s0 = inlined_call_operand.vmem [shape: bf16[2,2,4,256], index: 0, kind: input, shape index: {}]
  %s1 = inlined_call_operand.vmem [shape: f32[4,256], index: 1, kind: input, shape index: {}]
  %s2 = inlined_call_operand.vmem [shape: f32[4,1], index: 2, kind: input, shape index: {}]
  %s3 = inlined_call_operand.vmem [shape: f32[4,1], index: 3, kind: input, shape index: {}]
  %s4 = inlined_call_operand.vmem [shape: f32[9,4,1], index: 4, kind: input, shape index: {}]
  %s5 = inlined_call_operand.vmem [shape: f32[4,1], index: 5, kind: input, shape index: {}]
  %s6 = inlined_call_operand.vmem [shape: bf16[4,4], index: 6, kind: input, shape index: {}]
  %s7 = inlined_call_operand.vmem [shape: f32[4,1], index: 7, kind: input, shape index: {}]
  %s8 = inlined_call_operand.hbm [shape: bf16[2,4,512], index: 8, kind: output, shape index: {}]
  %s9 = sld [smem:[#allocation0]]
  $region65: #{tpu_custom_call.1} parent=0
    _
  %s11 = ssub.s32 1, %s9
  %s12 = scalar_select 0, %s11, %s9
  $region1: #{tpu_custom_call.1} parent=0
    #allocation2 [shape = 'u8[8192]{0}', space=vmem, size = 0x2000, scoped, tag = 'output window, operand 0']
    #allocation3 [shape = 's32[2]{0}', space=sflag, size = 0x8, scoped, tag = 'scoped memory for tpu_custom_call.1']
    %13 = vsyncpa [#allocation3], 0
    %s14 = scalar_lea.sflag [#allocation3], 1
    %15 = vsyncpa %s14, 0
    loop: start=0, step=1, limit=4
    $region2: #{tpu_custom_call.1} parent=1 // loop_pre_header
      _
    $region3: #{tpu_custom_call.1} parent=1 // loop_header
      %s17 = sphi 0, %s21
      %p18 = scmp.ge.s32.totalorder %s17, 4
      %s27 = sphi 0, %s29
      %s30 = sphi 0, %s27
      %s31 = sphi 0, %s30
      %s47 = sphi 0, %s31
      %s51 = sphi 0, %s51
      %s53 = sphi 0, %s51
      %s54 = sphi 0, %s53
      %s68 = sphi 0, %s54
      %s72 = sphi 0, %s72
      %s74 = sphi 0, %s72
      %s75 = sphi 0, %s74
      %s89 = sphi 0, %s75
      %s93 = sphi 0, %s93
      %s95 = sphi 0, %s93
      %s96 = sphi 0, %s95
      %s110 = sphi 0, %s96
      %s114 = sphi 0, %s114
      %s116 = sphi 0, %s114
      %s117 = sphi 0, %s116
      %s131 = sphi 0, %s117
      %s135 = sphi 0, %s135
      %s137 = sphi 0, %s135
      %s138 = sphi 0, %s137
      %s152 = sphi 0, %s138
      %s156 = sphi 0, %s156
      %s158 = sphi 0, %s156
      %s159 = sphi 0, %s158
      %s173 = sphi 0, %s159
      %s177 = sphi 0, %s177
      %s179 = sphi 0, %s177
      %s180 = sphi 0, %s179
      %s194 = sphi 0, %s180
      %s200 = sphi 0, %s202
      %s203 = sphi 0, %s200
      %s204 = sphi 0, %s203
      %s220 = sphi 0, %s204
    $region4: #{tpu_custom_call.1} parent=1 // loop_header_branch
      %20 = sbr.rel (%p18) target = $region8
    $region5: #{tpu_custom_call.1} parent=1 // loop_body
      %s22 = ssub.s32 %s17, 1
      %s23 = ssub.s32 %s17, 2
      %s24 = sadd.s32 %s17, 1
      %s25 = ssub.s32 %s17, %s24
      %p26 = scmp.eq.s32.totalorder %s25, 0
      %s28 = sadd.s32 %s27, 1
      %s29 = scalar_select %p26, %s27, %s28
      %p32 = pneg %p26
      %p33 = scmp.eq.s32.totalorder %s17, 1
      %p34 = por %p32, %p33
      %p35 = scmp.ne.s32.totalorder %s27, %s30
      %p36 = scmp.eq.s32.totalorder %s17, 0
      %p37 = por %p35, %p36
      %p38 = scmp.ne.s32.totalorder %s27, %s30
      %p39 = scmp.eq.s32.totalorder %s22, 1
      %p40 = por %p38, %p39
      %p41 = scmp.ne.s32.totalorder %s30, %s31
      %p42 = scmp.eq.s32.totalorder %s22, 0
      %p43 = por %p41, %p42
      %p44 = scmp.ne.s32.totalorder %s30, %s31
      %p45 = scmp.eq.s32.totalorder %s23, 1
      %p46 = por %p44, %p45
      %p48 = scmp.ne.s32.totalorder %s31, %s47
      %p49 = scmp.eq.s32.totalorder %s23, 0
      %p50 = por %p48, %p49
      %s52 = sadd.s32 %s51, 1
      %p55 = scmp.eq.s32.totalorder %s17, 1
      %p56 = scmp.ne.s32.totalorder %s51, %s53
      %p57 = scmp.eq.s32.totalorder %s17, 0
      %p58 = por %p56, %p57
      %p59 = scmp.ne.s32.totalorder %s51, %s53
      %p60 = scmp.eq.s32.totalorder %s22, 1
      %p61 = por %p59, %p60
      %p62 = scmp.ne.s32.totalorder %s53, %s54
      %p63 = scmp.eq.s32.totalorder %s22, 0
      %p64 = por %p62, %p63
      %p65 = scmp.ne.s32.totalorder %s53, %s54
      %p66 = scmp.eq.s32.totalorder %s23, 1
      %p67 = por %p65, %p66
      %p69 = scmp.ne.s32.totalorder %s54, %s68
      %p70 = scmp.eq.s32.totalorder %s23, 0
      %p71 = por %p69, %p70
      %s73 = sadd.s32 %s72, 1
      %p76 = scmp.eq.s32.totalorder %s17, 1
      %p77 = scmp.ne.s32.totalorder %s72, %s74
      %p78 = scmp.eq.s32.totalorder %s17, 0
      %p79 = por %p77, %p78
      %p80 = scmp.ne.s32.totalorder %s72, %s74
      %p81 = scmp.eq.s32.totalorder %s22, 1
      %p82 = por %p80, %p81
      %p83 = scmp.ne.s32.totalorder %s74, %s75
      %p84 = scmp.eq.s32.totalorder %s22, 0
      %p85 = por %p83, %p84
      %p86 = scmp.ne.s32.totalorder %s74, %s75
      %p87 = scmp.eq.s32.totalorder %s23, 1
      %p88 = por %p86, %p87
      %p90 = scmp.ne.s32.totalorder %s75, %s89
      %p91 = scmp.eq.s32.totalorder %s23, 0
      %p92 = por %p90, %p91
      %s94 = sadd.s32 %s93, 1
      %p97 = scmp.eq.s32.totalorder %s17, 1
      %p98 = scmp.ne.s32.totalorder %s93, %s95
      %p99 = scmp.eq.s32.totalorder %s17, 0
      %p100 = por %p98, %p99
      %p101 = scmp.ne.s32.totalorder %s93, %s95
      %p102 = scmp.eq.s32.totalorder %s22, 1
      %p103 = por %p101, %p102
      %p104 = scmp.ne.s32.totalorder %s95, %s96
      %p105 = scmp.eq.s32.totalorder %s22, 0
      %p106 = por %p104, %p105
      %p107 = scmp.ne.s32.totalorder %s95, %s96
      %p108 = scmp.eq.s32.totalorder %s23, 1
      %p109 = por %p107, %p108
      %p111 = scmp.ne.s32.totalorder %s96, %s110
      %p112 = scmp.eq.s32.totalorder %s23, 0
      %p113 = por %p111, %p112
      %s115 = sadd.s32 %s114, 1
      %p118 = scmp.eq.s32.totalorder %s17, 1
      %p119 = scmp.ne.s32.totalorder %s114, %s116
      %p120 = scmp.eq.s32.totalorder %s17, 0
      %p121 = por %p119, %p120
      %p122 = scmp.ne.s32.totalorder %s114, %s116
      %p123 = scmp.eq.s32.totalorder %s22, 1
      %p124 = por %p122, %p123
      %p125 = scmp.ne.s32.totalorder %s116, %s117
      %p126 = scmp.eq.s32.totalorder %s22, 0
      %p127 = por %p125, %p126
      %p128 = scmp.ne.s32.totalorder %s116, %s117
      %p129 = scmp.eq.s32.totalorder %s23, 1
      %p130 = por %p128, %p129
      %p132 = scmp.ne.s32.totalorder %s117, %s131
      %p133 = scmp.eq.s32.totalorder %s23, 0
      %p134 = por %p132, %p133
      %s136 = sadd.s32 %s135, 1
      %p139 = scmp.eq.s32.totalorder %s17, 1
      %p140 = scmp.ne.s32.totalorder %s135, %s137
      %p141 = scmp.eq.s32.totalorder %s17, 0
      %p142 = por %p140, %p141
      %p143 = scmp.ne.s32.totalorder %s135, %s137
      %p144 = scmp.eq.s32.totalorder %s22, 1
      %p145 = por %p143, %p144
      %p146 = scmp.ne.s32.totalorder %s137, %s138
      %p147 = scmp.eq.s32.totalorder %s22, 0
      %p148 = por %p146, %p147
      %p149 = scmp.ne.s32.totalorder %s137, %s138
      %p150 = scmp.eq.s32.totalorder %s23, 1
      %p151 = por %p149, %p150
      %p153 = scmp.ne.s32.totalorder %s138, %s152
      %p154 = scmp.eq.s32.totalorder %s23, 0
      %p155 = por %p153, %p154
      %s157 = sadd.s32 %s156, 1
      %p160 = scmp.eq.s32.totalorder %s17, 1
      %p161 = scmp.ne.s32.totalorder %s156, %s158
      %p162 = scmp.eq.s32.totalorder %s17, 0
      %p163 = por %p161, %p162
      %p164 = scmp.ne.s32.totalorder %s156, %s158
      %p165 = scmp.eq.s32.totalorder %s22, 1
      %p166 = por %p164, %p165
      %p167 = scmp.ne.s32.totalorder %s158, %s159
      %p168 = scmp.eq.s32.totalorder %s22, 0
      %p169 = por %p167, %p168
      %p170 = scmp.ne.s32.totalorder %s158, %s159
      %p171 = scmp.eq.s32.totalorder %s23, 1
      %p172 = por %p170, %p171
      %p174 = scmp.ne.s32.totalorder %s159, %s173
      %p175 = scmp.eq.s32.totalorder %s23, 0
      %p176 = por %p174, %p175
      %s178 = sadd.s32 %s177, 1
      %p181 = scmp.eq.s32.totalorder %s17, 1
      %p182 = scmp.ne.s32.totalorder %s177, %s179
      %p183 = scmp.eq.s32.totalorder %s17, 0
      %p184 = por %p182, %p183
      %p185 = scmp.ne.s32.totalorder %s177, %s179
      %p186 = scmp.eq.s32.totalorder %s22, 1
      %p187 = por %p185, %p186
      %p188 = scmp.ne.s32.totalorder %s179, %s180
      %p189 = scmp.eq.s32.totalorder %s22, 0
      %p190 = por %p188, %p189
      %p191 = scmp.ne.s32.totalorder %s179, %s180
      %p192 = scmp.eq.s32.totalorder %s23, 1
      %p193 = por %p191, %p192
      %p195 = scmp.ne.s32.totalorder %s180, %s194
      %p196 = scmp.eq.s32.totalorder %s23, 0
      %p197 = por %p195, %p196
      %s198 = ssub.s32 %s17, %s24
      %p199 = scmp.eq.s32.totalorder %s198, 0
      %s201 = sadd.s32 %s200, 1
      %s202 = scalar_select %p199, %s200, %s201
      %p205 = pneg %p199
      %p206 = scmp.eq.s32.totalorder %s17, 1
      %p207 = por %p205, %p206
      %p208 = scmp.ne.s32.totalorder %s200, %s203
      %p209 = scmp.eq.s32.totalorder %s17, 0
      %p210 = por %p208, %p209
      %p211 = scmp.ne.s32.totalorder %s200, %s203
      %p212 = scmp.eq.s32.totalorder %s22, 1
      %p213 = por %p211, %p212
      %p214 = scmp.ne.s32.totalorder %s203, %s204
      %p215 = scmp.eq.s32.totalorder %s22, 0
      %p216 = por %p214, %p215
      %p217 = scmp.ne.s32.totalorder %s203, %s204
      %p218 = scmp.eq.s32.totalorder %s23, 1
      %p219 = por %p217, %p218
      %p221 = scmp.ne.s32.totalorder %s204, %s220
      %p222 = scmp.eq.s32.totalorder %s23, 0
      %p223 = por %p221, %p222
      %p224 = scmp.le.s32.totalorder 1, %s17
      %p225 = scmp.lt.s32.totalorder %s17, 3
      %p226 = pnand %p224, %p225
      %p227 = pneg %p226
      // Predicated region
      $region9: #{tpu_custom_call.1} parent=5 // pred_check
        _
      $region10: #{tpu_custom_call.1} parent=5 // pred_check_branch
        %229 = sbr.rel (%p226) target = $region12
      $region11: #{tpu_custom_call.1} parent=5 // pred_region
        %s230 = ssub.s32 %s17, 1
        // Predicated region
        $region13: #{tpu_custom_call.1} parent=11 // pred_check
          %p231 = pneg %p64
        $region14: #{tpu_custom_call.1} parent=11 // pred_check_branch
          %233 = sbr.rel (%p231) target = $region16
        $region15: #{tpu_custom_call.1} parent=11 // pred_region
          _
        $region16: #{tpu_custom_call.1} parent=11 // pred_fallthru
          _
        // Predicated region
        $region17: #{tpu_custom_call.1} parent=11 // pred_check
          %p234 = pneg %p85
        $region18: #{tpu_custom_call.1} parent=11 // pred_check_branch
          %236 = sbr.rel (%p234) target = $region20
        $region19: #{tpu_custom_call.1} parent=11 // pred_region
          _
        $region20: #{tpu_custom_call.1} parent=11 // pred_fallthru
          _
        // Predicated region
        $region21: #{tpu_custom_call.1} parent=11 // pred_check
          %p237 = pneg %p106
        $region22: #{tpu_custom_call.1} parent=11 // pred_check_branch
          %239 = sbr.rel (%p237) target = $region24
        $region23: #{tpu_custom_call.1} parent=11 // pred_region
          _
        $region24: #{tpu_custom_call.1} parent=11 // pred_fallthru
          _
        // Predicated region
        $region25: #{tpu_custom_call.1} parent=11 // pred_check
          %p240 = pneg %p127
        $region26: #{tpu_custom_call.1} parent=11 // pred_check_branch
          %242 = sbr.rel (%p240) target = $region28
        $region27: #{tpu_custom_call.1} parent=11 // pred_region
          _
        $region28: #{tpu_custom_call.1} parent=11 // pred_fallthru
          _
        // Predicated region
        $region29: #{tpu_custom_call.1} parent=11 // pred_check
          %p243 = pneg %p148
        $region30: #{tpu_custom_call.1} parent=11 // pred_check_branch
          %245 = sbr.rel (%p243) target = $region32
        $region31: #{tpu_custom_call.1} parent=11 // pred_region
          _
        $region32: #{tpu_custom_call.1} parent=11 // pred_fallthru
          _
        // Predicated region
        $region33: #{tpu_custom_call.1} parent=11 // pred_check
          %p246 = pneg %p169
        $region34: #{tpu_custom_call.1} parent=11 // pred_check_branch
          %248 = sbr.rel (%p246) target = $region36
        $region35: #{tpu_custom_call.1} parent=11 // pred_region
          _
        $region36: #{tpu_custom_call.1} parent=11 // pred_fallthru
          _
        // Predicated region
        $region37: #{tpu_custom_call.1} parent=11 // pred_check
          %p249 = pneg %p190
        $region38: #{tpu_custom_call.1} parent=11 // pred_check_branch
          %251 = sbr.rel (%p249) target = $region40
        $region39: #{tpu_custom_call.1} parent=11 // pred_region
          _
        $region40: #{tpu_custom_call.1} parent=11 // pred_fallthru
          _
      $region12: #{tpu_custom_call.1} parent=5 // pred_fallthru
        _
      %p252 = scmp.lt.s32.totalorder %s17, 2
      // Predicated region
      $region41: #{tpu_custom_call.1} parent=5 // pred_check
        %p253 = pneg %p252
      $region42: #{tpu_custom_call.1} parent=5 // pred_check_branch
        %255 = sbr.rel (%p253) target = $region44
      $region43: #{tpu_custom_call.1} parent=5 // pred_region
        // Predicated region
        $region45: #{tpu_custom_call.1} parent=43 // pred_check
          %p256 = pneg %p37
        $region46: #{tpu_custom_call.1} parent=43 // pred_check_branch
          %258 = sbr.rel (%p256) target = $region48
        $region47: #{tpu_custom_call.1} parent=43 // pred_region
          %p259 = scmp.lt.s32.totalorder %s17, 1
          %s260 = scalar_select %p259, %s17, 1
          %s261 = smul.addr %s260, 4
          %s262 = smul.addr %s261, 2
          %s263 = scalar_lea.vmem %s0, %s262
        $region48: #{tpu_custom_call.1} parent=43 // pred_fallthru
          _
      $region44: #{tpu_custom_call.1} parent=5 // pred_fallthru
        _
      %p264 = scmp.le.s32.totalorder 1, %s17
      %p265 = scmp.lt.s32.totalorder %s17, 3
      %p266 = pnand %p264, %p265
      %p267 = pneg %p266
      // Predicated region
      $region49: #{tpu_custom_call.1} parent=5 // pred_check
        _
      $region50: #{tpu_custom_call.1} parent=5 // pred_check_branch
        %269 = sbr.rel (%p266) target = $region52
      $region51: #{tpu_custom_call.1} parent=5 // pred_region
        %s270 = ssub.s32 %s17, 1
        %p271 = scmp.lt.s32.totalorder %s22, 1
        %s272 = scalar_select %p271, %s22, 1
        %s273 = smul.addr %s272, 4
        %s274 = smul.addr %s273, 2
        %s275 = scalar_lea.vmem %s0, %s274
        %p276 = pneg %p43
        %p277 = pneg %p40
        %p278 = pneg %p64
        %p279 = pneg %p61
        %p280 = pneg %p85
        %p281 = pneg %p82
        %p282 = pneg %p106
        %p283 = pneg %p103
        %p284 = pneg %p127
        %p285 = pneg %p124
        %p286 = pneg %p148
        %p287 = pneg %p145
        %p288 = pneg %p169
        %p289 = pneg %p166
        %p290 = pneg %p190
        %p291 = pneg %p187
        %p292 = pneg %p216
        %p293 = pneg %p213
        %s294 = sand.u32 %s203, 1
        %s295 = scalar_lea.sflag [#allocation3], %s294
        %s296 = sand.u32 %s203, 1
        %s297 = smul.addr %s296, 8
        %s298 = scalar_lea.vmem [#allocation2], %s297
        %p299 = scmp.lt.s32.totalorder %s22, 1
        %s300 = scalar_select %p299, %s22, 1
        %s301 = smul.addr %s300, 4
        %s302 = smul.addr %s301, 2
        %s303 = scalar_lea.vmem %s0, %s302
        %v305 = vld [vmem:[%s2] sm:$0xf]
        %v306 = vld [vmem:[%s3] sm:$0xf]
        %v307 = vld [vmem:[%s4] sm:$0xf]
        %v308 = vld [vmem:[%s4 + $0x4] sm:$0xf]
        %v309 = vld [vmem:[%s4 + $0x8] sm:$0xf]
        %v310 = vld [vmem:[%s4 + $0xc] sm:$0xf]
        %v311 = vld [vmem:[%s4 + $0x10] sm:$0xf]
        %v312 = vld [vmem:[%s4 + $0x14] sm:$0xf]
        %v313 = vld [vmem:[%s4 + $0x18] sm:$0xf]
        %v314 = vld [vmem:[%s4 + $0x1c] sm:$0xf]
        %v315 = vld [vmem:[%s4 + $0x20] sm:$0xf]
        %v316 = vld [vmem:[%s5] sm:$0xf]
        %v317 = vld [vmem:[%s7] sm:$0xf]
        %v318 = vld [vmem:[%s6] sm:$0x3]
        %v319 = vld [vmem:[%s1] ss:$4 sm:$0x3]
        %s320 = scalar_lea.vmem %s1, 1
        %v321 = vld [vmem:[%s320] ss:$4 sm:$0x3]
        %s322 = scalar_lea.vmem %s1, 2
        %v323 = vld [vmem:[%s322] ss:$4 sm:$0x3]
        %s324 = scalar_lea.vmem %s1, 3
        %v325 = vld [vmem:[%s324] ss:$4 sm:$0x3]
        %v326 = vld [vmem:[%s303] sm:$0xf]
        %s327 = scalar_lea.vmem %s303, 4
        %v328 = vld [vmem:[%s327] sm:$0xf]
        %v329 = vunpack.c.l.bf16 %v328
        %331 = vset.pattern.permute.xlu0 0
        %332 = vperm.xlu0 %331, %v305
        %v333 = vpop.permute.xlu0 %332
        %v335 = vunpack.c.l.s4 839922192
        %v336 = vunpack.c.0.s8 %v335
        %v337 = vlaneseq
        %v338 = vshrl.u32 %v337, 7
        %v339 = vsub.s32 %v336, %v338
        %v340 = vrot.slane %v333, %v339
        %v342 = vmul.f32 %v329, %v340
        %344 = vset.pattern.permute.xlu0 0
        %345 = vperm.xlu0 %344, %v306
        %v346 = vpop.permute.xlu0 %345
        %v348 = vunpack.c.l.s4 839922192
        %v349 = vunpack.c.0.s8 %v348
        %v350 = vlaneseq
        %v351 = vshrl.u32 %v350, 7
        %v352 = vsub.s32 %v349, %v351
        %v353 = vrot.slane %v346, %v352
        %v355 = vadd.f32 %v342, %v353
        %v356 = vmax.f32 %v355, 0.0
        %v358 = vcombine.high %v356, %v356
        %360 = vrot.lane.b32.xlu0 %v356, 1
        %v361 = vpop.permute.xlu0 %360
        %362 = vrot.lane.b32.xlu0 %v358, 1
        %v363 = vpop.permute.xlu0 %362
        %v364 = vlaneseq
        %v365 = vand.u32 %v364, 127
        %vm366 = vcmp.lt.s32.totalorder %v365, 1
        %v367 = vsel %vm366, %v361, %v363
        %v368 = vsel %vm366, %v363, %v361
        %v370 = vlaneseq
        %v371 = vshrl.u32 %v370, 7
        %v372 = vsub.s32 0, %v371
        %v373 = vrot.slane %v319, %v372
        %v374 = vlaneseq
        %v375 = vshrl.u32 %v374, 7
        %v376 = vsub.s32 1, %v375
        %v377 = vrot.slane %v319, %v376
        %v380 = vmul.f32 %v368, %v373
        %v381 = vmul.f32 %v367, %v377
        %382 = vrot.lane.b32.xlu0 %v356, 127
        %v383 = vpop.permute.xlu0 %382
        %384 = vrot.lane.b32.xlu0 %v358, 127
        %v385 = vpop.permute.xlu0 %384
        %vm386 = vcmp.lt.s32.totalorder %v365, 127
        %v387 = vsel %vm386, %v383, %v385
        %v388 = vsel %vm386, %v385, %v383
        %v390 = vlaneseq
        %v391 = vshrl.u32 %v390, 7
        %v392 = vsub.s32 0, %v391
        %v393 = vrot.slane %v321, %v392
        %v394 = vlaneseq
        %v395 = vshrl.u32 %v394, 7
        %v396 = vsub.s32 1, %v395
        %v397 = vrot.slane %v321, %v396
        %v400 = vmul.f32 %v387, %v393
        %v401 = vmul.f32 %v388, %v397
        %403 = vset.pattern.permute.xlu0 0
        %404 = vperm.xlu0 %403, %v307
        %v405 = vpop.permute.xlu0 %404
        %v407 = vmul.f32 %v405, %v380
        %v408 = vmul.f32 %v405, %v381
        %410 = vset.pattern.permute.xlu0 0
        %411 = vperm.xlu0 %410, %v308
        %v412 = vpop.permute.xlu0 %411
        %v414 = vmul.f32 %v412, %v356
        %v415 = vmul.f32 %v412, %v358
        %v416 = vadd.f32 %v407, %v414
        %v417 = vadd.f32 %v408, %v415
        %419 = vset.pattern.permute.xlu0 0
        %420 = vperm.xlu0 %419, %v309
        %v421 = vpop.permute.xlu0 %420
        %v423 = vmul.f32 %v421, %v400
        %v424 = vmul.f32 %v421, %v401
        %v425 = vadd.f32 %v416, %v423
        %v426 = vadd.f32 %v417, %v424
        %428 = vset.pattern.permute.xlu0 0
        %429 = vperm.xlu0 %428, %v310
        %v430 = vpop.permute.xlu0 %429
        %v432 = vmul.f32 %v430, %v380
        %v433 = vmul.f32 %v430, %v381
        %435 = vset.pattern.permute.xlu0 0
        %436 = vperm.xlu0 %435, %v311
        %v437 = vpop.permute.xlu0 %436
        %v439 = vmul.f32 %v437, %v356
        %v440 = vmul.f32 %v437, %v358
        %v441 = vadd.f32 %v432, %v439
        %v442 = vadd.f32 %v433, %v440
        %444 = vset.pattern.permute.xlu0 0
        %445 = vperm.xlu0 %444, %v312
        %v446 = vpop.permute.xlu0 %445
        %v448 = vmul.f32 %v446, %v400
        %v449 = vmul.f32 %v446, %v401
        %v450 = vadd.f32 %v441, %v448
        %v451 = vadd.f32 %v442, %v449
        %453 = vset.pattern.permute.xlu0 0
        %454 = vperm.xlu0 %453, %v313
        %v455 = vpop.permute.xlu0 %454
        %v457 = vmul.f32 %v455, %v380
        %v458 = vmul.f32 %v455, %v381
        %460 = vset.pattern.permute.xlu0 0
        %461 = vperm.xlu0 %460, %v314
        %v462 = vpop.permute.xlu0 %461
        %v464 = vmul.f32 %v462, %v356
        %v465 = vmul.f32 %v462, %v358
        %v466 = vadd.f32 %v457, %v464
        %v467 = vadd.f32 %v458, %v465
        %469 = vset.pattern.permute.xlu0 0
        %470 = vperm.xlu0 %469, %v315
        %v471 = vpop.permute.xlu0 %470
        %v473 = vmul.f32 %v471, %v400
        %v474 = vmul.f32 %v471, %v401
        %v475 = vadd.f32 %v466, %v473
        %v476 = vadd.f32 %v467, %v474
        %477 = vrot.lane.b32.xlu0 %v425, 16
        %v478 = vpop.permute.xlu0 %477
        %479 = vrot.lane.b32.xlu0 %v426, 16
        %v480 = vpop.permute.xlu0 %479
        %vm481 = vcmp.lt.s32.totalorder %v365, 16
        %v482 = vsel %vm481, %v478, %v480
        %v483 = vsel %vm481, %v480, %v478
        %v485 = vlaneseq
        %v486 = vshrl.u32 %v485, 7
        %v487 = vsub.s32 0, %v486
        %v488 = vrot.slane %v323, %v487
        %v489 = vlaneseq
        %v490 = vshrl.u32 %v489, 7
        %v491 = vsub.s32 1, %v490
        %v492 = vrot.slane %v323, %v491
        %v495 = vmul.f32 %v483, %v488
        %v496 = vmul.f32 %v482, %v492
        %v497 = vadd.f32 %v450, %v495
        %v498 = vadd.f32 %v451, %v496
        %499 = vrot.lane.b32.xlu0 %v475, 112
        %v500 = vpop.permute.xlu0 %499
        %501 = vrot.lane.b32.xlu0 %v476, 112
        %v502 = vpop.permute.xlu0 %501
        %vm503 = vcmp.lt.s32.totalorder %v365, 112
        %v504 = vsel %vm503, %v500, %v502
        %v505 = vsel %vm503, %v502, %v500
        %v507 = vlaneseq
        %v508 = vshrl.u32 %v507, 7
        %v509 = vsub.s32 0, %v508
        %v510 = vrot.slane %v325, %v509
        %v511 = vlaneseq
        %v512 = vshrl.u32 %v511, 7
        %v513 = vsub.s32 1, %v512
        %v514 = vrot.slane %v325, %v513
        %v517 = vmul.f32 %v504, %v510
        %v518 = vmul.f32 %v505, %v514
        %v519 = vadd.f32 %v497, %v517
        %v520 = vadd.f32 %v498, %v518
        %522 = vset.pattern.permute.xlu0 0
        %523 = vperm.xlu0 %522, %v316
        %v524 = vpop.permute.xlu0 %523
        %v526 = vadd.f32 %v519, %v524
        %v527 = vadd.f32 %v520, %v524
        %v528 = vpack.c.bf16 %v526, %v526
        %v529 = vpack.c.bf16 %v527, %v527
        %531 = vset.pattern.permute.xlu0 0
        %532 = vperm.xlu0 %531, %v317
        %v533 = vpop.permute.xlu0 %532
        %vm535 = vcmask 31744
        %v537 = vsel %vm535, %v318, 0
        %vm539 = vcmask 1041408
        %v541 = vsel %vm539, %v528, 0
        %v544 = vsel %vm539, %v529, 0
        %546 = vmatprep.subr.bf16.mxu0 0
        %547 = vmatpush1.bf16.msra.mxu0 0
        %548 = vmatprep.subr.bf16.mxu0 0
        %549 = vmatpush1.bf16.msra.mxu0 0
        %550 = vmatprep.subr.bf16.mxu0 0
        %551 = vmatpush1.bf16.msra.mxu0 0
        %552 = vmatprep.subr.bf16.mxu0 0
        %553 = vmatpush1.bf16.msra.mxu0 0
        %554 = vmatprep.subr.bf16.mxu0 0
        %555 = vmatpush1.bf16.msra.mxu0 0
        %556 = vmatprep.subr.bf16.mxu0 0
        %557 = vmatpush1.bf16.msra.mxu0 0
        %558 = vmatprep.subr.bf16.mxu0 0
        %559 = vmatpush1.bf16.msra.mxu0 0
        %560 = vmatprep.subr.bf16.mxu0 %v544
        %561 = vmatpush1.bf16.msra.mxu0 %v541
        %562 = vmatprep.subr.bf16.mxu0 0
        %563 = vmatpush2.bf16.msra.mxu0 0
        %564 = vmatprep.subr.bf16.mxu0 0
        %565 = vmatpush2.bf16.msra.mxu0 0
        %566 = vmatprep.subr.bf16.mxu0 0
        %567 = vmatpush2.bf16.msra.mxu0 0
        %568 = vmatprep.subr.bf16.mxu0 0
        %569 = vmatpush2.bf16.msra.mxu0 0
        %570 = vmatprep.subr.bf16.mxu0 0
        %571 = vmatpush2.bf16.msra.mxu0 0
        %572 = vmatprep.subr.bf16.mxu0 0
        %573 = vmatpush2.bf16.msra.mxu0 0
        %574 = vmatprep.subr.bf16.mxu0 0
        %575 = vmatpush2.bf16.msra.mxu0 0
        %576 = vmatprep.subr.bf16.mxu0 0
        %577 = vmatpush2.bf16.msra.mxu0 0
        %578 = vmatprep.mubr.bf16.mxu0 0
        %579 = vmatmul.mubr.bf16.gmra.mxu0 %v537
        %v580 = vpop.f32.mrf.mxu0
        %v581 = vadd.f32 %v533, %v580
        %v582 = vpop.f32.mrf.mxu0
        %v583 = vadd.f32 %v533, %v582
        %v584 = vpop.f32.mrf.mxu0
        %v585 = vpop.f32.mrf.mxu0
        %586 = vdwg.mxu0
        %v587 = vmax.f32 %v581, 0.0
        %v588 = vmax.f32 %v583, 0.0
        %589 = vst [vmem:[%s298] sm:$0xf] %v326
        %v590 = vpack.c.bf16 %v587, %v587
        %v591 = vpack.c.bf16 %v588, %v588
        %v594 = vcombine.low %v590, %v591
        %v596 = vunpack.c.l.s4 1983009808
        %v597 = vunpack.c.0.s8 %v596
        %v598 = vlaneseq
        %v599 = vshrl.u32 %v598, 7
        %v600 = vsub.s32 %v597, %v599
        %v601 = vrot.slane %v594, %v600
        %603 = vst [vmem:[%s298 + $0x4] sm:$0xf] %v601
        %s604 = sand.u32 %s203, 1
        %s605 = scalar_lea.sflag [#allocation3], %s604
        %s606 = sand.u32 %s203, 1
        %s607 = smul.addr %s606, 8
        %s608 = scalar_lea.vmem [#allocation2], %s607
        // Predicated region
        $region53: #{tpu_custom_call.1} parent=51 // pred_check
          %p609 = pneg %p213
        $region54: #{tpu_custom_call.1} parent=51 // pred_check_branch
          %611 = sbr.rel (%p609) target = $region56
        $region55: #{tpu_custom_call.1} parent=51 // pred_region
          %s613 = ssub.s32 128, 128
          %614 = vsyncadd %s605, %s613
          %s615 = smul.addr %s22, 4
          %s616 = smul.addr %s615, 32
          %s617 = scalar_lea.hbm %s8, %s616
          %s619 = sshll.u32 %s608, 4
          %s620 = int_to_ptr.vmem [resolvable:$true] %s619
          %622 = dma.vmem_to_hbm [thread:$0]  %s620, 128, %s617, %s605
        $region56: #{tpu_custom_call.1} parent=51 // pred_fallthru
          _
      $region52: #{tpu_custom_call.1} parent=5 // pred_fallthru
        _
      %p623 = scmp.le.s32.totalorder 2, %s17
      // Predicated region
      $region57: #{tpu_custom_call.1} parent=5 // pred_check
        %p624 = pneg %p623
      $region58: #{tpu_custom_call.1} parent=5 // pred_check_branch
        %626 = sbr.rel (%p624) target = $region60
      $region59: #{tpu_custom_call.1} parent=5 // pred_region
        %s627 = ssub.s32 %s17, 2
        // Predicated region
        $region61: #{tpu_custom_call.1} parent=59 // pred_check
          %p628 = pneg %p219
        $region62: #{tpu_custom_call.1} parent=59 // pred_check_branch
          %630 = sbr.rel (%p628) target = $region64
        $region63: #{tpu_custom_call.1} parent=59 // pred_region
          %s631 = sand.u32 %s204, 1
          %s632 = scalar_lea.sflag [#allocation3], %s631
          %s633 = sand.u32 %s204, 1
          %s634 = smul.addr %s633, 8
          %s635 = scalar_lea.vmem [#allocation2], %s634
          %636 = dma.done %s632, 128
        $region64: #{tpu_custom_call.1} parent=59 // pred_fallthru
          _
      $region60: #{tpu_custom_call.1} parent=5 // pred_fallthru
        _
    $region6: #{tpu_custom_call.1} parent=1 // loop_footer
      %s21 = sadd.s32 1, %s17
    $region7: #{tpu_custom_call.1} parent=1 // loop_footer_branch
      %16 = sbr.rel target = $region3
    $region8: #{tpu_custom_call.1} parent=1 // loop_exit
      _
    %637 = vsyncpa [#allocation3], 1
    %s638 = scalar_lea.sflag [#allocation3], 1
    %639 = vsyncpa %s638, 1

</llo_original>
